<compile_context>
chip_gen: v5e
topology: v5e:2x2
jax: 0.10.0
libtpu: 0.0.40
codegen_flags: <defaults>
</compile_context>

<pallas_src>
import functools

import jax
import jax.numpy as jnp
from jax.experimental import pallas as pl
from jax.experimental.pallas import tpu as pltpu


def _round_up(x, m):
    return (x + m - 1) // m * m


def _cdiv(a, b):
    return -(-a // b)


def _hw_defaults():
    """Generation-aware defaults: (row tile tm, vmem_limit_bytes).

    v5e / v6e have 128 MiB physical VMEM -> big row tiles (2048) amortise the
    ~0.35 us per-grid-step overhead; v7x has only 64 MiB -> keep tm <= 1024 and
    request less scoped VMEM so the compiler never spills.
    """
    try:
        vmem = pltpu.get_tpu_info().vmem_capacity_bytes
    except Exception:  # unknown backend / interpret mode: be conservative
        vmem = 64 * 1024 * 1024
    if vmem >= 100 * 1024 * 1024:          # v5e / v6e (128 MiB physical)
        return 2048, 64 * 1024 * 1024
    return 1024, 40 * 1024 * 1024          # v7x (64 MiB physical)


def _rbu_kernel(xs_ref, wsub_ref, bsub_ref, wconv_ref, bconv_ref,
                gamma_ref, beta_ref, wup_ref, bup_ref, out_ref):
    """One (tm, Cin) row tile -> one (tm, Cp) output tile.

    Three bf16 MXU matmuls with f32 accumulation; elementwise chain in f32.
    The identity branch (`upsample`) matmul is deferred to the end so its
    (tm, Cp) f32 result has a short live range; xs stays resident in its VMEM
    input buffer anyway, so re-reading it is a cheap vld.
    """
    xs = xs_ref[...]                                              # (tm, Cin) bf16

    # subpel_conv: 1x1 conv; the stride is folded into the row selection the
    # wrapper does (stride-s 1x1 conv == subsample + channel matmul).
    a = jnp.dot(xs, wsub_ref[...],
                preferred_element_type=jnp.float32) + bsub_ref[...]
    # LeakyReLU (negative_slope = 0.01) as a single VALU op.
    a = jnp.maximum(a, 0.01 * a)

    # conv: 1x1, Cout -> Cout (weight pre-transposed to (Cp, Cp)).
    h = jnp.dot(a.astype(wconv_ref.dtype), wconv_ref[...],
                preferred_element_type=jnp.float32) + bconv_ref[...]

    # inverse GDN: h * sqrt(beta + sum_j gamma[i, j] * h_j^2)
    norm = jnp.sqrt(jnp.dot((h * h).astype(gamma_ref.dtype), gamma_ref[...],
                            preferred_element_type=jnp.float32) + beta_ref[...])

    # identity branch (`upsample`): same subsampled rows, its own 1x1 conv.
    idn = jnp.dot(xs_ref[...], wup_ref[...],
                  preferred_element_type=jnp.float32) + bup_ref[...]

    # bf16 store: halves the dominant HBM write stream; lanes are 128-padded
    # so the store stays unmasked / lane-dense.
    out_ref[...] = (h * norm + idn).astype(out_ref.dtype)


def _pack_params(params, compute_dtype):
    """Host-side packing: transpose weights to (K, N), zero-pad Cout to a
    multiple of 128 (lane-dense output), cast matmul weights to bf16, keep
    biases / beta in f32 (they are added to the f32 accumulators)."""
    w_sub, b_sub, w_conv, b_conv, gamma, beta, w_up, b_up = params
    cout = w_sub.shape[0]
    cp = _round_up(cout, 128)
    po = cp - cout
    pad_w = lambda w: jnp.pad(w.T, ((0, 0), (0, po))).astype(compute_dtype)
    pad_b = lambda b: jnp.pad(b, (0, po)).reshape(1, cp).astype(jnp.float32)
    w_sub_t = pad_w(w_sub)                                        # (Cin, Cp)
    w_up_t = pad_w(w_up)                                          # (Cin, Cp)
    w_conv_t = jnp.pad(w_conv.T, ((0, po), (0, po))).astype(compute_dtype)
    gamma_t = jnp.pad(gamma.T, ((0, po), (0, po))).astype(compute_dtype)
    packed = (w_sub_t, pad_b(b_sub), w_conv_t, pad_b(b_conv),
              gamma_t, pad_b(beta), w_up_t, pad_b(b_up))
    return packed, cp


@functools.partial(
    jax.jit,
    static_argnames=("stride", "tm", "input_layout", "output_layout",
                     "compute_dtype", "store_dtype"))
def residual_block_upsample(x, params, *, stride=2, tm=None,
                            input_layout="NCHW", output_layout="NCHW",
                            compute_dtype=jnp.bfloat16,
                            store_dtype=jnp.bfloat16):
    """ResidualBlockUpsample forward.

    x: NCHW float32 (PyTorch layout, default) or NHWC.
    output_layout:
      "NCHW" - PyTorch-equivalent (N, Cout, H//s, W//s) float32.
      "NHWC" - (N, H//s, W//s, Cout) float32; saves the NHWC->NCHW HBM pass.
      "MC"   - flat (rows, Cout) in `store_dtype` for chaining into the next
               Pallas block (no post-kernel layout pass at all).
    """
    w_sub = params[0]
    cout, cin = w_sub.shape
    packed, cp = _pack_params(params, compute_dtype)

    if input_layout == "NCHW":
        N, _, H, W = x.shape
        x_sub = x[:, :, ::stride, ::stride]
        Ho, Wo = x_sub.shape[2], x_sub.shape[3]
        # NCHW -> (M, Cin): under jit, slice + transpose + reshape + cast fuse
        # into one HBM layout pass.
        # TODO(synk): fold this strided subsample/transpose into the kernel via
        # a manual strided DMA (memory_space=pl.ANY) to remove the pre-pass
        # entirely; with an NHWC producer use input_layout="NHWC", which
        # already skips the transpose.
        xs = jnp.transpose(x_sub, (0, 2, 3, 1)).reshape(-1, cin)
    elif input_layout == "NHWC":
        N, H, W, _ = x.shape
        x_sub = x[:, ::stride, ::stride, :]
        Ho, Wo = x_sub.shape[1], x_sub.shape[2]
        xs = x_sub.reshape(-1, cin)
    else:
        raise ValueError(f"unknown input_layout: {input_layout}")
    xs = xs.astype(compute_dtype)

    M = N * Ho * Wo
    tm_req, vmem_limit = _hw_defaults()
    if tm is not None:
        tm_req = tm
    # Grid >= 2 and even so v7x's two TensorCores stay load-balanced (harmless
    # on single-core v5e/v6e); row tile a multiple of 16 (bf16 sublane pack).
    g = max(2, _cdiv(M, tm_req))
    g += g % 2
    tm_eff = _round_up(_cdiv(M, g), 16)
    Mp = tm_eff * g
    if Mp != M:
        xs = jnp.pad(xs, ((0, Mp - M), (0, 0)))

    full = lambda i: (0, 0)
    # Weight/bias blocks are grid-invariant; Pallas fetches them once.  Their
    # double-buffers cost < 1 MiB even at Cout=192, so single-buffering them
    # (pl.Buffered(1)) is not worth the constraint, even on v7x's 64 MiB VMEM.
    out_flat = pl.pallas_call(
        _rbu_kernel,
        out_shape=jax.ShapeDtypeStruct((Mp, cp), store_dtype),
        grid_spec=pltpu.PrefetchScalarGridSpec(
            num_scalar_prefetch=0,
            grid=(g,),
            in_specs=[
                pl.BlockSpec((tm_eff, cin), lambda i: (i, 0)),  # xs row tile
                pl.BlockSpec((cin, cp), full),                  # w_sub^T
                pl.BlockSpec((1, cp), full),                    # b_sub
                pl.BlockSpec((cp, cp), full),                   # w_conv^T
                pl.BlockSpec((1, cp), full),                    # b_conv
                pl.BlockSpec((cp, cp), full),                   # gamma^T
                pl.BlockSpec((1, cp), full),                    # beta
                pl.BlockSpec((cin, cp), full),                  # w_up^T
                pl.BlockSpec((1, cp), full),                    # b_up
            ],
            out_specs=pl.BlockSpec((tm_eff, cp), lambda i: (i, 0)),
        ),
        compiler_params=pltpu.CompilerParams(
            dimension_semantics=("parallel",),
            vmem_limit_bytes=vmem_limit),
    )(xs, *packed)

    if output_layout == "MC":
        return out_flat[:M, :cout]
    out = out_flat[:M, :cout].reshape(N, Ho, Wo, cout).astype(jnp.float32)
    if output_layout == "NHWC":
        return out
    return out.transpose(0, 3, 1, 2)   # PyTorch-equivalent NCHW


def _reference(x, params, stride=2, compute_dtype=jnp.bfloat16,
               store_dtype=jnp.bfloat16):
    """Pure-JAX reference of the same math (same bf16 matmul inputs and the
    same bf16 rounding of the stored result)."""
    w_sub, b_sub, w_conv, b_conv, gamma, beta, w_up, b_up = params
    dot = lambda a, b: jnp.dot(a.astype(compute_dtype), b.astype(compute_dtype),
                               preferred_element_type=jnp.float32)
    x_sub = x[:, :, ::stride, ::stride]
    xs = jnp.transpose(x_sub, (0, 2, 3, 1))              # NHWC
    a = dot(xs, w_sub.T) + b_sub
    a = jnp.maximum(a, 0.01 * a)
    h = dot(a, w_conv.T) + b_conv
    norm = jnp.sqrt(dot(h * h, gamma.T) + beta)
    out = h * norm + (dot(xs, w_up.T) + b_up)
    out = out.astype(store_dtype).astype(jnp.float32)
    return out.transpose(0, 3, 1, 2)


def _init_params(key, in_ch, out_ch):
    ks = jax.random.split(key, 6)
    w_sub = 0.1 * jax.random.normal(ks[0], (out_ch, in_ch), jnp.float32)
    b_sub = 0.1 * jax.random.normal(ks[1], (out_ch,), jnp.float32)
    w_conv = 0.1 * jax.random.normal(ks[2], (out_ch, out_ch), jnp.float32)
    b_conv = 0.1 * jax.random.normal(ks[3], (out_ch,), jnp.float32)
    w_up = 0.1 * jax.random.normal(ks[4], (out_ch, in_ch), jnp.float32)
    b_up = 0.1 * jax.random.normal(ks[5], (out_ch,), jnp.float32)
    # GDN params (non-negative, as the reparametrizer guarantees):
    # beta init -> 1.0, gamma init -> 0.1 * I (CompressAI defaults).
    beta = jnp.ones((out_ch,), jnp.float32)
    gamma = 0.1 * jnp.eye(out_ch, dtype=jnp.float32)
    return (w_sub, b_sub, w_conv, b_conv, gamma, beta, w_up, b_up)


if __name__ == "__main__":
    key = jax.random.PRNGKey(0)
    kx, kp = jax.random.split(key)

    N, Cin, H, W = 2, 4, 16, 16
    Cout, upsample = 8, 2
    x = jax.random.normal(kx, (N, Cin, H, W), jnp.float32)
    params = _init_params(kp, Cin, Cout)

    # PyTorch-equivalent path (NCHW in, NCHW f32 out).
    out = residual_block_upsample(x, params, stride=upsample)
    out = jax.block_until_ready(out)

    ref = _reference(x, params, stride=upsample)
    assert out.shape == (N, Cout, H // upsample, W // upsample)
    assert jnp.allclose(out, ref, atol=2e-3, rtol=1e-2), "mismatch vs reference"

    # Chaining-friendly path: NHWC input, flat (rows, Cout) bf16 output — no
    # layout passes around the kernel.
    x_nhwc = jnp.transpose(x, (0, 2, 3, 1))
    out_mc = residual_block_upsample(x_nhwc, params, stride=upsample,
                                     input_layout="NHWC", output_layout="MC")
    out_mc = jax.block_until_ready(out_mc)
    ref_mc = ref.transpose(0, 2, 3, 1).reshape(-1, Cout)
    assert jnp.allclose(out_mc.astype(jnp.float32), ref_mc,
                        atol=2e-3, rtol=1e-2), "mismatch vs reference (MC path)"

    print("KERNEL_OK")
</pallas_src>

<mosaic_0001>
module attributes {stable_mosaic.version = 11 : i64} {
  func.func @_rbu_kernel(%arg0: i32, %arg1: memref<64x4xbf16, #tpu.memory_space<vmem>>, %arg2: memref<4x128xbf16, #tpu.memory_space<vmem>>, %arg3: memref<1x128xf32, #tpu.memory_space<vmem>>, %arg4: memref<128x128xbf16, #tpu.memory_space<vmem>>, %arg5: memref<1x128xf32, #tpu.memory_space<vmem>>, %arg6: memref<128x128xbf16, #tpu.memory_space<vmem>>, %arg7: memref<1x128xf32, #tpu.memory_space<vmem>>, %arg8: memref<4x128xbf16, #tpu.memory_space<vmem>>, %arg9: memref<1x128xf32, #tpu.memory_space<vmem>>, %arg10: memref<64x128xbf16, #tpu.memory_space<vmem>>) attributes {dimension_semantics = [#tpu.dimension_semantics<parallel>], iteration_bounds = array<i64: 2>, scalar_prefetch = 0 : i64, scratch_operands = 0 : i64, tpu.core_type = #tpu.core_type<tc>, window_params = [{transform_indices = @transform_0, window_bounds = array<i64: 64, 4>}, {pipeline_mode = #tpu.pipeline_mode<synchronous>, transform_indices = @transform_1, window_bounds = array<i64: 4, 128>}, {pipeline_mode = #tpu.pipeline_mode<synchronous>, transform_indices = @transform_2, window_bounds = array<i64: 1, 128>}, {pipeline_mode = #tpu.pipeline_mode<synchronous>, transform_indices = @transform_3, window_bounds = array<i64: 128, 128>}, {pipeline_mode = #tpu.pipeline_mode<synchronous>, transform_indices = @transform_4, window_bounds = array<i64: 1, 128>}, {pipeline_mode = #tpu.pipeline_mode<synchronous>, transform_indices = @transform_5, window_bounds = array<i64: 128, 128>}, {pipeline_mode = #tpu.pipeline_mode<synchronous>, transform_indices = @transform_6, window_bounds = array<i64: 1, 128>}, {pipeline_mode = #tpu.pipeline_mode<synchronous>, transform_indices = @transform_7, window_bounds = array<i64: 4, 128>}, {pipeline_mode = #tpu.pipeline_mode<synchronous>, transform_indices = @transform_8, window_bounds = array<i64: 1, 128>}, {transform_indices = @transform_9, window_bounds = array<i64: 64, 128>}]} {
    %c0 = arith.constant 0 : index
    %c0_0 = arith.constant 0 : index
    %0 = vector.load %arg1[%c0, %c0_0] : memref<64x4xbf16, #tpu.memory_space<vmem>>, vector<64x4xbf16>
    %c0_1 = arith.constant 0 : index
    %c0_2 = arith.constant 0 : index
    %1 = vector.load %arg2[%c0_1, %c0_2] : memref<4x128xbf16, #tpu.memory_space<vmem>>, vector<4x128xbf16>
    %cst = arith.constant dense<0.000000e+00> : vector<64x128xf32>
    %2 = tpu.matmul %0, %1, %cst {dimension_numbers = #tpu.dot_dimension_numbers<[1], [0], [0], [1], [0, 0, 1, 1], [], []>} : vector<64x4xbf16>, vector<4x128xbf16>, vector<64x128xf32> -> vector<64x128xf32>
    %c0_3 = arith.constant 0 : index
    %c0_4 = arith.constant 0 : index
    %3 = vector.load %arg3[%c0_3, %c0_4] : memref<1x128xf32, #tpu.memory_space<vmem>>, vector<1x128xf32>
    %4 = vector.broadcast %3 : vector<1x128xf32> to vector<64x128xf32>
    %5 = arith.addf %2, %4 : vector<64x128xf32>
    %cst_5 = arith.constant 0.00999999977 : f32
    %6 = vector.broadcast %cst_5 : f32 to vector<64x128xf32>
    %7 = arith.mulf %6, %5 : vector<64x128xf32>
    %8 = arith.maximumf %5, %7 : vector<64x128xf32>
    %9 = arith.truncf %8 : vector<64x128xf32> to vector<64x128xbf16>
    %c0_6 = arith.constant 0 : index
    %c0_7 = arith.constant 0 : index
    %10 = vector.load %arg4[%c0_6, %c0_7] : memref<128x128xbf16, #tpu.memory_space<vmem>>, vector<128x128xbf16>
    %cst_8 = arith.constant dense<0.000000e+00> : vector<64x128xf32>
    %11 = tpu.matmul %9, %10, %cst_8 {dimension_numbers = #tpu.dot_dimension_numbers<[1], [0], [0], [1], [0, 0, 1, 1], [], []>} : vector<64x128xbf16>, vector<128x128xbf16>, vector<64x128xf32> -> vector<64x128xf32>
    %c0_9 = arith.constant 0 : index
    %c0_10 = arith.constant 0 : index
    %12 = vector.load %arg5[%c0_9, %c0_10] : memref<1x128xf32, #tpu.memory_space<vmem>>, vector<1x128xf32>
    %13 = vector.broadcast %12 : vector<1x128xf32> to vector<64x128xf32>
    %14 = arith.addf %11, %13 : vector<64x128xf32>
    %15 = arith.mulf %14, %14 : vector<64x128xf32>
    %16 = arith.truncf %15 : vector<64x128xf32> to vector<64x128xbf16>
    %c0_11 = arith.constant 0 : index
    %c0_12 = arith.constant 0 : index
    %17 = vector.load %arg6[%c0_11, %c0_12] : memref<128x128xbf16, #tpu.memory_space<vmem>>, vector<128x128xbf16>
    %cst_13 = arith.constant dense<0.000000e+00> : vector<64x128xf32>
    %18 = tpu.matmul %16, %17, %cst_13 {dimension_numbers = #tpu.dot_dimension_numbers<[1], [0], [0], [1], [0, 0, 1, 1], [], []>} : vector<64x128xbf16>, vector<128x128xbf16>, vector<64x128xf32> -> vector<64x128xf32>
    %c0_14 = arith.constant 0 : index
    %c0_15 = arith.constant 0 : index
    %19 = vector.load %arg7[%c0_14, %c0_15] : memref<1x128xf32, #tpu.memory_space<vmem>>, vector<1x128xf32>
    %20 = vector.broadcast %19 : vector<1x128xf32> to vector<64x128xf32>
    %21 = arith.addf %18, %20 : vector<64x128xf32>
    %22 = math.sqrt %21 : vector<64x128xf32>
    %c0_16 = arith.constant 0 : index
    %c0_17 = arith.constant 0 : index
    %23 = vector.load %arg1[%c0_16, %c0_17] : memref<64x4xbf16, #tpu.memory_space<vmem>>, vector<64x4xbf16>
    %c0_18 = arith.constant 0 : index
    %c0_19 = arith.constant 0 : index
    %24 = vector.load %arg8[%c0_18, %c0_19] : memref<4x128xbf16, #tpu.memory_space<vmem>>, vector<4x128xbf16>
    %cst_20 = arith.constant dense<0.000000e+00> : vector<64x128xf32>
    %25 = tpu.matmul %23, %24, %cst_20 {dimension_numbers = #tpu.dot_dimension_numbers<[1], [0], [0], [1], [0, 0, 1, 1], [], []>} : vector<64x4xbf16>, vector<4x128xbf16>, vector<64x128xf32> -> vector<64x128xf32>
    %c0_21 = arith.constant 0 : index
    %c0_22 = arith.constant 0 : index
    %26 = vector.load %arg9[%c0_21, %c0_22] : memref<1x128xf32, #tpu.memory_space<vmem>>, vector<1x128xf32>
    %27 = vector.broadcast %26 : vector<1x128xf32> to vector<64x128xf32>
    %28 = arith.addf %25, %27 : vector<64x128xf32>
    %29 = arith.mulf %14, %22 : vector<64x128xf32>
    %30 = arith.addf %29, %28 : vector<64x128xf32>
    %31 = arith.truncf %30 : vector<64x128xf32> to vector<64x128xbf16>
    %c0_23 = arith.constant 0 : index
    %c0_24 = arith.constant 0 : index
    %32 = vector.load %arg10[%c0_23, %c0_24] : memref<64x128xbf16, #tpu.memory_space<vmem>>, vector<64x128xbf16>
    tpu.vector_store %arg10[%c0_23, %c0_24], %31 {strides = array<i32>} : memref<64x128xbf16, #tpu.memory_space<vmem>>, vector<64x128xbf16>,
    return
  }
  func.func @transform_0(%arg0: i32) -> (i32, i32) {
    %c0_i32 = arith.constant 0 : i32
    %c0_i32_0 = arith.constant 0 : i32
    return %arg0, %c0_i32 : i32, i32
  }
  func.func @transform_1(%arg0: i32) -> (i32, i32) {
    %c0_i32 = arith.constant 0 : i32
    %c0_i32_0 = arith.constant 0 : i32
    %c0_i32_1 = arith.constant 0 : i32
    return %c0_i32, %c0_i32_0 : i32, i32
  }
  func.func @transform_2(%arg0: i32) -> (i32, i32) {
    %c0_i32 = arith.constant 0 : i32
    %c0_i32_0 = arith.constant 0 : i32
    %c0_i32_1 = arith.constant 0 : i32
    return %c0_i32, %c0_i32_0 : i32, i32
  }
  func.func @transform_3(%arg0: i32) -> (i32, i32) {
    %c0_i32 = arith.constant 0 : i32
    %c0_i32_0 = arith.constant 0 : i32
    %c0_i32_1 = arith.constant 0 : i32
    return %c0_i32, %c0_i32_0 : i32, i32
  }
  func.func @transform_4(%arg0: i32) -> (i32, i32) {
    %c0_i32 = arith.constant 0 : i32
    %c0_i32_0 = arith.constant 0 : i32
    %c0_i32_1 = arith.constant 0 : i32
    return %c0_i32, %c0_i32_0 : i32, i32
  }
  func.func @transform_5(%arg0: i32) -> (i32, i32) {
    %c0_i32 = arith.constant 0 : i32
    %c0_i32_0 = arith.constant 0 : i32
    %c0_i32_1 = arith.constant 0 : i32
    return %c0_i32, %c0_i32_0 : i32, i32
  }
  func.func @transform_6(%arg0: i32) -> (i32, i32) {
    %c0_i32 = arith.constant 0 : i32
    %c0_i32_0 = arith.constant 0 : i32
    %c0_i32_1 = arith.constant 0 : i32
    return %c0_i32, %c0_i32_0 : i32, i32
  }
  func.func @transform_7(%arg0: i32) -> (i32, i32) {
    %c0_i32 = arith.constant 0 : i32
    %c0_i32_0 = arith.constant 0 : i32
    %c0_i32_1 = arith.constant 0 : i32
    return %c0_i32, %c0_i32_0 : i32, i32
  }
  func.func @transform_8(%arg0: i32) -> (i32, i32) {
    %c0_i32 = arith.constant 0 : i32
    %c0_i32_0 = arith.constant 0 : i32
    %c0_i32_1 = arith.constant 0 : i32
    return %c0_i32, %c0_i32_0 : i32, i32
  }
  func.func @transform_9(%arg0: i32) -> (i32, i32) {
    %c0_i32 = arith.constant 0 : i32
    %c0_i32_0 = arith.constant 0 : i32
    return %arg0, %c0_i32 : i32, i32
  }
}

</mosaic_0001>

<llo_original>
// kernel: residual_block_upsample.1
$region0: #{residual_block_upsample.1}
  #allocation0 [shape = 'u32[]', space=smem, size = 0x4, offset = 0x4, fixed_abs, tag = 'smem constant byte address 0x4 - core index']
  #allocation1 [shape = 'u32[72,128]{1,0:T(1,128)}', space=vmem, size = 0x9000, scoped, tag = 'internal scratch']
  %s0 = inlined_call_operand.vmem [shape: bf16[128,4], index: 0, kind: input, shape index: {}]
  %s1 = inlined_call_operand.vmem [shape: bf16[4,128], index: 1, kind: input, shape index: {}]
  %s2 = inlined_call_operand.vmem [shape: f32[1,128], index: 2, kind: input, shape index: {}]
  %s3 = inlined_call_operand.vmem [shape: bf16[128,128], index: 3, kind: input, shape index: {}]
  %s4 = inlined_call_operand.vmem [shape: f32[1,128], index: 4, kind: input, shape index: {}]
  %s5 = inlined_call_operand.vmem [shape: bf16[128,128], index: 5, kind: input, shape index: {}]
  %s6 = inlined_call_operand.vmem [shape: f32[1,128], index: 6, kind: input, shape index: {}]
  %s7 = inlined_call_operand.vmem [shape: bf16[4,128], index: 7, kind: input, shape index: {}]
  %s8 = inlined_call_operand.vmem [shape: f32[1,128], index: 8, kind: input, shape index: {}]
  %s9 = inlined_call_operand.vmem [shape: bf16[128,128], index: 9, kind: output, shape index: {}]
  %s10 = sld [smem:[#allocation0]]
  $region69: #{residual_block_upsample.1} parent=0
    _
  %s12 = ssub.s32 1, %s10
  %s13 = scalar_select 0, %s12, %s10
  loop: start=0, step=1, limit=4
  $region2: #{residual_block_upsample.1} parent=0 // loop_pre_header
    _
  $region3: #{residual_block_upsample.1} parent=0 // loop_header
    %s15 = sphi 0, %s19
    %p16 = scmp.ge.s32.totalorder %s15, 4
    %s25 = sphi 0, %s27
    %s28 = sphi 0, %s25
    %s29 = sphi 0, %s28
    %s45 = sphi 0, %s29
    %s49 = sphi 0, %s49
    %s51 = sphi 0, %s49
    %s52 = sphi 0, %s51
    %s66 = sphi 0, %s52
    %s70 = sphi 0, %s70
    %s72 = sphi 0, %s70
    %s73 = sphi 0, %s72
    %s87 = sphi 0, %s73
    %s91 = sphi 0, %s91
    %s93 = sphi 0, %s91
    %s94 = sphi 0, %s93
    %s108 = sphi 0, %s94
    %s112 = sphi 0, %s112
    %s114 = sphi 0, %s112
    %s115 = sphi 0, %s114
    %s129 = sphi 0, %s115
    %s133 = sphi 0, %s133
    %s135 = sphi 0, %s133
    %s136 = sphi 0, %s135
    %s150 = sphi 0, %s136
    %s154 = sphi 0, %s154
    %s156 = sphi 0, %s154
    %s157 = sphi 0, %s156
    %s171 = sphi 0, %s157
    %s175 = sphi 0, %s175
    %s177 = sphi 0, %s175
    %s178 = sphi 0, %s177
    %s192 = sphi 0, %s178
    %s196 = sphi 0, %s196
    %s198 = sphi 0, %s196
    %s199 = sphi 0, %s198
    %s213 = sphi 0, %s199
    %s219 = sphi 0, %s221
    %s222 = sphi 0, %s219
    %s223 = sphi 0, %s222
    %s239 = sphi 0, %s223
  $region4: #{residual_block_upsample.1} parent=0 // loop_header_branch
    %18 = sbr.rel (%p16) target = $region8
  $region5: #{residual_block_upsample.1} parent=0 // loop_body
    %s20 = ssub.s32 %s15, 1
    %s21 = ssub.s32 %s15, 2
    %s22 = sadd.s32 %s15, 1
    %s23 = ssub.s32 %s15, %s22
    %p24 = scmp.eq.s32.totalorder %s23, 0
    %s26 = sadd.s32 %s25, 1
    %s27 = scalar_select %p24, %s25, %s26
    %p30 = pneg %p24
    %p31 = scmp.eq.s32.totalorder %s15, 1
    %p32 = por %p30, %p31
    %p33 = scmp.ne.s32.totalorder %s25, %s28
    %p34 = scmp.eq.s32.totalorder %s15, 0
    %p35 = por %p33, %p34
    %p36 = scmp.ne.s32.totalorder %s25, %s28
    %p37 = scmp.eq.s32.totalorder %s20, 1
    %p38 = por %p36, %p37
    %p39 = scmp.ne.s32.totalorder %s28, %s29
    %p40 = scmp.eq.s32.totalorder %s20, 0
    %p41 = por %p39, %p40
    %p42 = scmp.ne.s32.totalorder %s28, %s29
    %p43 = scmp.eq.s32.totalorder %s21, 1
    %p44 = por %p42, %p43
    %p46 = scmp.ne.s32.totalorder %s29, %s45
    %p47 = scmp.eq.s32.totalorder %s21, 0
    %p48 = por %p46, %p47
    %s50 = sadd.s32 %s49, 1
    %p53 = scmp.eq.s32.totalorder %s15, 1
    %p54 = scmp.ne.s32.totalorder %s49, %s51
    %p55 = scmp.eq.s32.totalorder %s15, 0
    %p56 = por %p54, %p55
    %p57 = scmp.ne.s32.totalorder %s49, %s51
    %p58 = scmp.eq.s32.totalorder %s20, 1
    %p59 = por %p57, %p58
    %p60 = scmp.ne.s32.totalorder %s51, %s52
    %p61 = scmp.eq.s32.totalorder %s20, 0
    %p62 = por %p60, %p61
    %p63 = scmp.ne.s32.totalorder %s51, %s52
    %p64 = scmp.eq.s32.totalorder %s21, 1
    %p65 = por %p63, %p64
    %p67 = scmp.ne.s32.totalorder %s52, %s66
    %p68 = scmp.eq.s32.totalorder %s21, 0
    %p69 = por %p67, %p68
    %s71 = sadd.s32 %s70, 1
    %p74 = scmp.eq.s32.totalorder %s15, 1
    %p75 = scmp.ne.s32.totalorder %s70, %s72
    %p76 = scmp.eq.s32.totalorder %s15, 0
    %p77 = por %p75, %p76
    %p78 = scmp.ne.s32.totalorder %s70, %s72
    %p79 = scmp.eq.s32.totalorder %s20, 1
    %p80 = por %p78, %p79
    %p81 = scmp.ne.s32.totalorder %s72, %s73
    %p82 = scmp.eq.s32.totalorder %s20, 0
    %p83 = por %p81, %p82
    %p84 = scmp.ne.s32.totalorder %s72, %s73
    %p85 = scmp.eq.s32.totalorder %s21, 1
    %p86 = por %p84, %p85
    %p88 = scmp.ne.s32.totalorder %s73, %s87
    %p89 = scmp.eq.s32.totalorder %s21, 0
    %p90 = por %p88, %p89
    %s92 = sadd.s32 %s91, 1
    %p95 = scmp.eq.s32.totalorder %s15, 1
    %p96 = scmp.ne.s32.totalorder %s91, %s93
    %p97 = scmp.eq.s32.totalorder %s15, 0
    %p98 = por %p96, %p97
    %p99 = scmp.ne.s32.totalorder %s91, %s93
    %p100 = scmp.eq.s32.totalorder %s20, 1
    %p101 = por %p99, %p100
    %p102 = scmp.ne.s32.totalorder %s93, %s94
    %p103 = scmp.eq.s32.totalorder %s20, 0
    %p104 = por %p102, %p103
    %p105 = scmp.ne.s32.totalorder %s93, %s94
    %p106 = scmp.eq.s32.totalorder %s21, 1
    %p107 = por %p105, %p106
    %p109 = scmp.ne.s32.totalorder %s94, %s108
    %p110 = scmp.eq.s32.totalorder %s21, 0
    %p111 = por %p109, %p110
    %s113 = sadd.s32 %s112, 1
    %p116 = scmp.eq.s32.totalorder %s15, 1
    %p117 = scmp.ne.s32.totalorder %s112, %s114
    %p118 = scmp.eq.s32.totalorder %s15, 0
    %p119 = por %p117, %p118
    %p120 = scmp.ne.s32.totalorder %s112, %s114
    %p121 = scmp.eq.s32.totalorder %s20, 1
    %p122 = por %p120, %p121
    %p123 = scmp.ne.s32.totalorder %s114, %s115
    %p124 = scmp.eq.s32.totalorder %s20, 0
    %p125 = por %p123, %p124
    %p126 = scmp.ne.s32.totalorder %s114, %s115
    %p127 = scmp.eq.s32.totalorder %s21, 1
    %p128 = por %p126, %p127
    %p130 = scmp.ne.s32.totalorder %s115, %s129
    %p131 = scmp.eq.s32.totalorder %s21, 0
    %p132 = por %p130, %p131
    %s134 = sadd.s32 %s133, 1
    %p137 = scmp.eq.s32.totalorder %s15, 1
    %p138 = scmp.ne.s32.totalorder %s133, %s135
    %p139 = scmp.eq.s32.totalorder %s15, 0
    %p140 = por %p138, %p139
    %p141 = scmp.ne.s32.totalorder %s133, %s135
    %p142 = scmp.eq.s32.totalorder %s20, 1
    %p143 = por %p141, %p142
    %p144 = scmp.ne.s32.totalorder %s135, %s136
    %p145 = scmp.eq.s32.totalorder %s20, 0
    %p146 = por %p144, %p145
    %p147 = scmp.ne.s32.totalorder %s135, %s136
    %p148 = scmp.eq.s32.totalorder %s21, 1
    %p149 = por %p147, %p148
    %p151 = scmp.ne.s32.totalorder %s136, %s150
    %p152 = scmp.eq.s32.totalorder %s21, 0
    %p153 = por %p151, %p152
    %s155 = sadd.s32 %s154, 1
    %p158 = scmp.eq.s32.totalorder %s15, 1
    %p159 = scmp.ne.s32.totalorder %s154, %s156
    %p160 = scmp.eq.s32.totalorder %s15, 0
    %p161 = por %p159, %p160
    %p162 = scmp.ne.s32.totalorder %s154, %s156
    %p163 = scmp.eq.s32.totalorder %s20, 1
    %p164 = por %p162, %p163
    %p165 = scmp.ne.s32.totalorder %s156, %s157
    %p166 = scmp.eq.s32.totalorder %s20, 0
    %p167 = por %p165, %p166
    %p168 = scmp.ne.s32.totalorder %s156, %s157
    %p169 = scmp.eq.s32.totalorder %s21, 1
    %p170 = por %p168, %p169
    %p172 = scmp.ne.s32.totalorder %s157, %s171
    %p173 = scmp.eq.s32.totalorder %s21, 0
    %p174 = por %p172, %p173
    %s176 = sadd.s32 %s175, 1
    %p179 = scmp.eq.s32.totalorder %s15, 1
    %p180 = scmp.ne.s32.totalorder %s175, %s177
    %p181 = scmp.eq.s32.totalorder %s15, 0
    %p182 = por %p180, %p181
    %p183 = scmp.ne.s32.totalorder %s175, %s177
    %p184 = scmp.eq.s32.totalorder %s20, 1
    %p185 = por %p183, %p184
    %p186 = scmp.ne.s32.totalorder %s177, %s178
    %p187 = scmp.eq.s32.totalorder %s20, 0
    %p188 = por %p186, %p187
    %p189 = scmp.ne.s32.totalorder %s177, %s178
    %p190 = scmp.eq.s32.totalorder %s21, 1
    %p191 = por %p189, %p190
    %p193 = scmp.ne.s32.totalorder %s178, %s192
    %p194 = scmp.eq.s32.totalorder %s21, 0
    %p195 = por %p193, %p194
    %s197 = sadd.s32 %s196, 1
    %p200 = scmp.eq.s32.totalorder %s15, 1
    %p201 = scmp.ne.s32.totalorder %s196, %s198
    %p202 = scmp.eq.s32.totalorder %s15, 0
    %p203 = por %p201, %p202
    %p204 = scmp.ne.s32.totalorder %s196, %s198
    %p205 = scmp.eq.s32.totalorder %s20, 1
    %p206 = por %p204, %p205
    %p207 = scmp.ne.s32.totalorder %s198, %s199
    %p208 = scmp.eq.s32.totalorder %s20, 0
    %p209 = por %p207, %p208
    %p210 = scmp.ne.s32.totalorder %s198, %s199
    %p211 = scmp.eq.s32.totalorder %s21, 1
    %p212 = por %p210, %p211
    %p214 = scmp.ne.s32.totalorder %s199, %s213
    %p215 = scmp.eq.s32.totalorder %s21, 0
    %p216 = por %p214, %p215
    %s217 = ssub.s32 %s15, %s22
    %p218 = scmp.eq.s32.totalorder %s217, 0
    %s220 = sadd.s32 %s219, 1
    %s221 = scalar_select %p218, %s219, %s220
    %p224 = pneg %p218
    %p225 = scmp.eq.s32.totalorder %s15, 1
    %p226 = por %p224, %p225
    %p227 = scmp.ne.s32.totalorder %s219, %s222
    %p228 = scmp.eq.s32.totalorder %s15, 0
    %p229 = por %p227, %p228
    %p230 = scmp.ne.s32.totalorder %s219, %s222
    %p231 = scmp.eq.s32.totalorder %s20, 1
    %p232 = por %p230, %p231
    %p233 = scmp.ne.s32.totalorder %s222, %s223
    %p234 = scmp.eq.s32.totalorder %s20, 0
    %p235 = por %p233, %p234
    %p236 = scmp.ne.s32.totalorder %s222, %s223
    %p237 = scmp.eq.s32.totalorder %s21, 1
    %p238 = por %p236, %p237
    %p240 = scmp.ne.s32.totalorder %s223, %s239
    %p241 = scmp.eq.s32.totalorder %s21, 0
    %p242 = por %p240, %p241
    %p243 = scmp.le.s32.totalorder 1, %s15
    %p244 = scmp.lt.s32.totalorder %s15, 3
    %p245 = pnand %p243, %p244
    %p246 = pneg %p245
    // Predicated region
    $region9: #{residual_block_upsample.1} parent=5 // pred_check
      _
    $region10: #{residual_block_upsample.1} parent=5 // pred_check_branch
      %248 = sbr.rel (%p245) target = $region12
    $region11: #{residual_block_upsample.1} parent=5 // pred_region
      %s249 = ssub.s32 %s15, 1
      // Predicated region
      $region13: #{residual_block_upsample.1} parent=11 // pred_check
        %p250 = pneg %p62
      $region14: #{residual_block_upsample.1} parent=11 // pred_check_branch
        %252 = sbr.rel (%p250) target = $region16
      $region15: #{residual_block_upsample.1} parent=11 // pred_region
        _
      $region16: #{residual_block_upsample.1} parent=11 // pred_fallthru
        _
      // Predicated region
      $region17: #{residual_block_upsample.1} parent=11 // pred_check
        %p253 = pneg %p83
      $region18: #{residual_block_upsample.1} parent=11 // pred_check_branch
        %255 = sbr.rel (%p253) target = $region20
      $region19: #{residual_block_upsample.1} parent=11 // pred_region
        _
      $region20: #{residual_block_upsample.1} parent=11 // pred_fallthru
        _
      // Predicated region
      $region21: #{residual_block_upsample.1} parent=11 // pred_check
        %p256 = pneg %p104
      $region22: #{residual_block_upsample.1} parent=11 // pred_check_branch
        %258 = sbr.rel (%p256) target = $region24
      $region23: #{residual_block_upsample.1} parent=11 // pred_region
        _
      $region24: #{residual_block_upsample.1} parent=11 // pred_fallthru
        _
      // Predicated region
      $region25: #{residual_block_upsample.1} parent=11 // pred_check
        %p259 = pneg %p125
      $region26: #{residual_block_upsample.1} parent=11 // pred_check_branch
        %261 = sbr.rel (%p259) target = $region28
      $region27: #{residual_block_upsample.1} parent=11 // pred_region
        _
      $region28: #{residual_block_upsample.1} parent=11 // pred_fallthru
        _
      // Predicated region
      $region29: #{residual_block_upsample.1} parent=11 // pred_check
        %p262 = pneg %p146
      $region30: #{residual_block_upsample.1} parent=11 // pred_check_branch
        %264 = sbr.rel (%p262) target = $region32
      $region31: #{residual_block_upsample.1} parent=11 // pred_region
        _
      $region32: #{residual_block_upsample.1} parent=11 // pred_fallthru
        _
      // Predicated region
      $region33: #{residual_block_upsample.1} parent=11 // pred_check
        %p265 = pneg %p167
      $region34: #{residual_block_upsample.1} parent=11 // pred_check_branch
        %267 = sbr.rel (%p265) target = $region36
      $region35: #{residual_block_upsample.1} parent=11 // pred_region
        _
      $region36: #{residual_block_upsample.1} parent=11 // pred_fallthru
        _
      // Predicated region
      $region37: #{residual_block_upsample.1} parent=11 // pred_check
        %p268 = pneg %p188
      $region38: #{residual_block_upsample.1} parent=11 // pred_check_branch
        %270 = sbr.rel (%p268) target = $region40
      $region39: #{residual_block_upsample.1} parent=11 // pred_region
        _
      $region40: #{residual_block_upsample.1} parent=11 // pred_fallthru
        _
      // Predicated region
      $region41: #{residual_block_upsample.1} parent=11 // pred_check
        %p271 = pneg %p209
      $region42: #{residual_block_upsample.1} parent=11 // pred_check_branch
        %273 = sbr.rel (%p271) target = $region44
      $region43: #{residual_block_upsample.1} parent=11 // pred_region
        _
      $region44: #{residual_block_upsample.1} parent=11 // pred_fallthru
        _
    $region12: #{residual_block_upsample.1} parent=5 // pred_fallthru
      _
    %p274 = scmp.lt.s32.totalorder %s15, 2
    // Predicated region
    $region45: #{residual_block_upsample.1} parent=5 // pred_check
      %p275 = pneg %p274
    $region46: #{residual_block_upsample.1} parent=5 // pred_check_branch
      %277 = sbr.rel (%p275) target = $region48
    $region47: #{residual_block_upsample.1} parent=5 // pred_region
      // Predicated region
      $region49: #{residual_block_upsample.1} parent=47 // pred_check
        %p278 = pneg %p35
      $region50: #{residual_block_upsample.1} parent=47 // pred_check_branch
        %280 = sbr.rel (%p278) target = $region52
      $region51: #{residual_block_upsample.1} parent=47 // pred_region
        %s281 = smul.u32 8, %s15
        %p282 = scmp.lt.s32.totalorder %s281, 15
        %s283 = scalar_select %p282, %s281, 15
        %s284 = smul.addr %s283, 4
        %s285 = scalar_lea.vmem %s0, %s284
        %s286 = smul.u32 8, %s15
      $region52: #{residual_block_upsample.1} parent=47 // pred_fallthru
        _
    $region48: #{residual_block_upsample.1} parent=5 // pred_fallthru
      _
    %p287 = scmp.le.s32.totalorder 1, %s15
    %p288 = scmp.lt.s32.totalorder %s15, 3
    %p289 = pnand %p287, %p288
    %p290 = pneg %p289
    // Predicated region
    $region53: #{residual_block_upsample.1} parent=5 // pred_check
      _
    $region54: #{residual_block_upsample.1} parent=5 // pred_check_branch
      %292 = sbr.rel (%p289) target = $region56
    $region55: #{residual_block_upsample.1} parent=5 // pred_region
      %s293 = ssub.s32 %s15, 1
      %s294 = smul.u32 8, %s20
      %p295 = scmp.lt.s32.totalorder %s294, 15
      %s296 = scalar_select %p295, %s294, 15
      %s297 = smul.addr %s296, 4
      %s298 = scalar_lea.vmem %s0, %s297
      %p299 = pneg %p41
      %p300 = pneg %p38
      %p301 = pneg %p62
      %p302 = pneg %p59
      %p303 = pneg %p83
      %p304 = pneg %p80
      %p305 = pneg %p104
      %p306 = pneg %p101
      %p307 = pneg %p125
      %p308 = pneg %p122
      %p309 = pneg %p146
      %p310 = pneg %p143
      %p311 = pneg %p167
      %p312 = pneg %p164
      %p313 = pneg %p188
      %p314 = pneg %p185
      %p315 = pneg %p209
      %p316 = pneg %p206
      %p317 = pneg %p235
      %p318 = pneg %p232
      %s319 = smul.u32 8, %s20
      %p320 = scmp.lt.s32.totalorder %s319, 15
      %s321 = scalar_select %p320, %s319, 15
      %s322 = smul.addr %s321, 4
      %s323 = scalar_lea.vmem %s9, %s322
      %s324 = smul.u32 8, %s20
      %p325 = scmp.lt.s32.totalorder %s324, 15
      %s326 = scalar_select %p325, %s324, 15
      %s327 = smul.addr %s326, 4
      %s328 = scalar_lea.vmem %s0, %s327
      %s329 = smul.u32 8, %s20
      %s330 = smul.u32 8, %s20
      %p331 = scmp.lt.s32.totalorder %s330, 15
      %s332 = scalar_select %p331, %s330, 15
      %s333 = smul.addr %s332, 4
      %s334 = scalar_lea.vmem %s9, %s333
      %s335 = smul.u32 8, %s20
      %v337 = vld [vmem:[%s328] sm:$0xf]
      %v338 = vld [vmem:[%s328 + $0x4] sm:$0xf]
      %v339 = vld [vmem:[%s328 + $0x8] sm:$0xf]
      %v340 = vld [vmem:[%s328 + $0xc] sm:$0xf]
      %v341 = vld [vmem:[%s328 + $0x10] sm:$0xf]
      %v342 = vld [vmem:[%s328 + $0x14] sm:$0xf]
      %v343 = vld [vmem:[%s328 + $0x18] sm:$0xf]
      %v344 = vld [vmem:[%s328 + $0x1c] sm:$0xf]
      %v345 = vld [vmem:[%s1] sm:$0x3]
      %v346 = vld [vmem:[%s2] sm:$0x1]
      %v348 = vperm.slane %v346, 0
      %v358 = vunpack.c.l.b16 %v337
      %v359 = vunpack.c.l.b16 %v338
      %v360 = vunpack.c.l.b16 %v339
      %v361 = vunpack.c.l.b16 %v340
      %v362 = vunpack.c.l.b16 %v341
      %v363 = vunpack.c.l.b16 %v342
      %v364 = vunpack.c.l.b16 %v343
      %v365 = vunpack.c.l.b16 %v344
      %v366 = vpack.c.b16 %v359, %v358
      %v367 = vpack.c.b16 %v361, %v360
      %v368 = vpack.c.b16 %v363, %v362
      %v369 = vpack.c.b16 %v365, %v364
      %vm370 = vcmask 31744
      %v372 = vsel %vm370, %v366, 0
      %v375 = vsel %vm370, %v367, 0
      %v378 = vsel %vm370, %v368, 0
      %v381 = vsel %vm370, %v369, 0
      %vm383 = vcmask 1041408
      %v385 = vsel %vm383, %v345, 0
      %387 = vmatpush.bf16.msra.mxu0 0
      %388 = vmatpush.bf16.msra.mxu0 0
      %389 = vmatpush.bf16.msra.mxu0 0
      %390 = vmatpush.bf16.msra.mxu0 0
      %391 = vmatpush.bf16.msra.mxu0 0
      %392 = vmatpush.bf16.msra.mxu0 0
      %393 = vmatpush.bf16.msra.mxu0 0
      %394 = vmatpush.bf16.msra.mxu0 %v385
      %395 = vmatmul.bf16.gmra.mxu0 %v372
      %v396 = vpop.f32.mrf.mxu0
      %v397 = vadd.f32 %v348, %v396
      %v398 = vpop.f32.mrf.mxu0
      %v399 = vadd.f32 %v348, %v398
      %400 = vmatmul.bf16.gmra.mxu0 %v375
      %v401 = vpop.f32.mrf.mxu0
      %v402 = vadd.f32 %v348, %v401
      %v403 = vpop.f32.mrf.mxu0
      %v404 = vadd.f32 %v348, %v403
      %405 = vmatmul.bf16.gmra.mxu0 %v378
      %v406 = vpop.f32.mrf.mxu0
      %v407 = vadd.f32 %v348, %v406
      %v408 = vpop.f32.mrf.mxu0
      %v409 = vadd.f32 %v348, %v408
      %410 = vmatmul.bf16.gmra.mxu0 %v381
      %v411 = vpop.f32.mrf.mxu0
      %v412 = vadd.f32 %v348, %v411
      %v413 = vpop.f32.mrf.mxu0
      %v414 = vadd.f32 %v348, %v413
      %415 = vdwg.mxu0
      %v416 = vmul.f32 %v397, 0.01
      %v417 = vmul.f32 %v399, 0.01
      %v418 = vmul.f32 %v402, 0.01
      %v419 = vmul.f32 %v404, 0.01
      %v420 = vmul.f32 %v407, 0.01
      %v421 = vmul.f32 %v409, 0.01
      %v422 = vmul.f32 %v412, 0.01
      %v423 = vmul.f32 %v414, 0.01
      %v424 = vmax.f32 %v397, %v416
      %v425 = vmax.f32 %v399, %v417
      %v426 = vmax.f32 %v402, %v418
      %v427 = vmax.f32 %v404, %v419
      %v428 = vmax.f32 %v407, %v420
      %v429 = vmax.f32 %v409, %v421
      %v430 = vmax.f32 %v412, %v422
      %v431 = vmax.f32 %v414, %v423
      %v432 = vpack.c.bf16 %v425, %v424
      %v433 = vpack.c.bf16 %v427, %v426
      %v434 = vpack.c.bf16 %v429, %v428
      %v435 = vpack.c.bf16 %v431, %v430
      %v436 = vld [vmem:[%s3] sm:$0xf]
      %v437 = vld [vmem:[%s3 + $0x4] sm:$0xf]
      %v438 = vld [vmem:[%s3 + $0x8] sm:$0xf]
      %v439 = vld [vmem:[%s3 + $0xc] sm:$0xf]
      %v440 = vld [vmem:[%s3 + $0x10] sm:$0xf]
      %v441 = vld [vmem:[%s3 + $0x14] sm:$0xf]
      %v442 = vld [vmem:[%s3 + $0x18] sm:$0xf]
      %v443 = vld [vmem:[%s3 + $0x1c] sm:$0xf]
      %v444 = vld [vmem:[%s3 + $0x20] sm:$0xf]
      %v445 = vld [vmem:[%s3 + $0x24] sm:$0xf]
      %v446 = vld [vmem:[%s3 + $0x28] sm:$0xf]
      %v447 = vld [vmem:[%s3 + $0x2c] sm:$0xf]
      %v448 = vld [vmem:[%s3 + $0x30] sm:$0xf]
      %v449 = vld [vmem:[%s3 + $0x34] sm:$0xf]
      %v450 = vld [vmem:[%s3 + $0x38] sm:$0xf]
      %v451 = vld [vmem:[%s3 + $0x3c] sm:$0xf]
      %v452 = vld [vmem:[%s4] sm:$0x1]
      %v454 = vperm.slane %v452, 0
      %v472 = vunpack.c.l.b16 %v436
      %v473 = vunpack.c.l.b16 %v437
      %v474 = vunpack.c.l.b16 %v438
      %v475 = vunpack.c.l.b16 %v439
      %v476 = vunpack.c.l.b16 %v440
      %v477 = vunpack.c.l.b16 %v441
      %v478 = vunpack.c.l.b16 %v442
      %v479 = vunpack.c.l.b16 %v443
      %v480 = vunpack.c.l.b16 %v444
      %v481 = vunpack.c.l.b16 %v445
      %v482 = vunpack.c.l.b16 %v446
      %v483 = vunpack.c.l.b16 %v447
      %v484 = vunpack.c.l.b16 %v448
      %v485 = vunpack.c.l.b16 %v449
      %v486 = vunpack.c.l.b16 %v450
      %v487 = vunpack.c.l.b16 %v451
      %v488 = vpack.c.b16 %v473, %v472
      %v489 = vpack.c.b16 %v475, %v474
      %v490 = vpack.c.b16 %v477, %v476
      %v491 = vpack.c.b16 %v479, %v478
      %v492 = vpack.c.b16 %v481, %v480
      %v493 = vpack.c.b16 %v483, %v482
      %v494 = vpack.c.b16 %v485, %v484
      %v495 = vpack.c.b16 %v487, %v486
      %504 = vmatpush.bf16.msra.mxu0 %v495
      %505 = vmatpush.bf16.msra.mxu0 %v494
      %506 = vmatpush.bf16.msra.mxu0 %v493
      %507 = vmatpush.bf16.msra.mxu0 %v492
      %508 = vmatpush.bf16.msra.mxu0 %v491
      %509 = vmatpush.bf16.msra.mxu0 %v490
      %510 = vmatpush.bf16.msra.mxu0 %v489
      %511 = vmatpush.bf16.msra.mxu0 %v488
      %512 = vmatmul.bf16.gmra.mxu0 %v432
      %v513 = vpop.f32.mrf.mxu0
      %v514 = vadd.f32 %v454, %v513
      %v515 = vpop.f32.mrf.mxu0
      %v516 = vadd.f32 %v454, %v515
      %517 = vmatmul.bf16.gmra.mxu0 %v433
      %v518 = vpop.f32.mrf.mxu0
      %v519 = vadd.f32 %v454, %v518
      %v520 = vpop.f32.mrf.mxu0
      %v521 = vadd.f32 %v454, %v520
      %522 = vmatmul.bf16.gmra.mxu0 %v434
      %v523 = vpop.f32.mrf.mxu0
      %v524 = vadd.f32 %v454, %v523
      %v525 = vpop.f32.mrf.mxu0
      %v526 = vadd.f32 %v454, %v525
      %527 = vmatmul.bf16.gmra.mxu0 %v435
      %v528 = vpop.f32.mrf.mxu0
      %v529 = vadd.f32 %v454, %v528
      %v530 = vpop.f32.mrf.mxu0
      %v531 = vadd.f32 %v454, %v530
      %532 = vdwg.mxu0
      %v533 = vmul.f32 %v514, %v514
      %v534 = vmul.f32 %v516, %v516
      %v535 = vmul.f32 %v519, %v519
      %v536 = vmul.f32 %v521, %v521
      %v537 = vmul.f32 %v524, %v524
      %v538 = vmul.f32 %v526, %v526
      %v539 = vmul.f32 %v529, %v529
      %v540 = vmul.f32 %v531, %v531
      %v541 = vpack.c.bf16 %v534, %v533
      %v542 = vpack.c.bf16 %v536, %v535
      %v543 = vpack.c.bf16 %v538, %v537
      %v544 = vpack.c.bf16 %v540, %v539
      %v545 = vld [vmem:[%s5] sm:$0xf]
      %v546 = vld [vmem:[%s5 + $0x4] sm:$0xf]
      %v547 = vld [vmem:[%s5 + $0x8] sm:$0xf]
      %v548 = vld [vmem:[%s5 + $0xc] sm:$0xf]
      %v549 = vld [vmem:[%s5 + $0x10] sm:$0xf]
      %v550 = vld [vmem:[%s5 + $0x14] sm:$0xf]
      %v551 = vld [vmem:[%s5 + $0x18] sm:$0xf]
      %v552 = vld [vmem:[%s5 + $0x1c] sm:$0xf]
      %v553 = vld [vmem:[%s5 + $0x20] sm:$0xf]
      %v554 = vld [vmem:[%s5 + $0x24] sm:$0xf]
      %v555 = vld [vmem:[%s5 + $0x28] sm:$0xf]
      %v556 = vld [vmem:[%s5 + $0x2c] sm:$0xf]
      %v557 = vld [vmem:[%s5 + $0x30] sm:$0xf]
      %v558 = vld [vmem:[%s5 + $0x34] sm:$0xf]
      %v559 = vld [vmem:[%s5 + $0x38] sm:$0xf]
      %v560 = vld [vmem:[%s5 + $0x3c] sm:$0xf]
      %v561 = vld [vmem:[%s6] sm:$0x1]
      %v563 = vperm.slane %v561, 0
      %v581 = vunpack.c.l.b16 %v545
      %v582 = vunpack.c.l.b16 %v546
      %v583 = vunpack.c.l.b16 %v547
      %v584 = vunpack.c.l.b16 %v548
      %v585 = vunpack.c.l.b16 %v549
      %v586 = vunpack.c.l.b16 %v550
      %v587 = vunpack.c.l.b16 %v551
      %v588 = vunpack.c.l.b16 %v552
      %v589 = vunpack.c.l.b16 %v553
      %v590 = vunpack.c.l.b16 %v554
      %v591 = vunpack.c.l.b16 %v555
      %v592 = vunpack.c.l.b16 %v556
      %v593 = vunpack.c.l.b16 %v557
      %v594 = vunpack.c.l.b16 %v558
      %v595 = vunpack.c.l.b16 %v559
      %v596 = vunpack.c.l.b16 %v560
      %v597 = vpack.c.b16 %v582, %v581
      %v598 = vpack.c.b16 %v584, %v583
      %v599 = vpack.c.b16 %v586, %v585
      %v600 = vpack.c.b16 %v588, %v587
      %v601 = vpack.c.b16 %v590, %v589
      %v602 = vpack.c.b16 %v592, %v591
      %v603 = vpack.c.b16 %v594, %v593
      %v604 = vpack.c.b16 %v596, %v595
      %613 = vmatpush.bf16.msra.mxu0 %v604
      %614 = vmatpush.bf16.msra.mxu0 %v603
      %615 = vmatpush.bf16.msra.mxu0 %v602
      %616 = vmatpush.bf16.msra.mxu0 %v601
      %617 = vmatpush.bf16.msra.mxu0 %v600
      %618 = vmatpush.bf16.msra.mxu0 %v599
      %619 = vmatpush.bf16.msra.mxu0 %v598
      %620 = vmatpush.bf16.msra.mxu0 %v597
      %621 = vmatmul.bf16.gmra.mxu0 %v541
      %v622 = vpop.f32.mrf.mxu0
      %v623 = vadd.f32 %v563, %v622
      %v624 = vpop.f32.mrf.mxu0
      %v625 = vadd.f32 %v563, %v624
      %626 = vmatmul.bf16.gmra.mxu0 %v542
      %v627 = vpop.f32.mrf.mxu0
      %v628 = vadd.f32 %v563, %v627
      %v629 = vpop.f32.mrf.mxu0
      %v630 = vadd.f32 %v563, %v629
      %631 = vmatmul.bf16.gmra.mxu0 %v543
      %v632 = vpop.f32.mrf.mxu0
      %v633 = vadd.f32 %v563, %v632
      %v634 = vpop.f32.mrf.mxu0
      %v635 = vadd.f32 %v563, %v634
      %636 = vmatmul.bf16.gmra.mxu0 %v544
      %v637 = vpop.f32.mrf.mxu0
      %v638 = vadd.f32 %v563, %v637
      %v639 = vpop.f32.mrf.mxu0
      %v640 = vadd.f32 %v563, %v639
      %641 = vdwg.mxu0
      %v642 = vrsqrt.pop %v623
      %v643 = vmul.f32 %v642, %v623
      %v644 = vmul.f32 %v643, %v642
      %v645 = vmul.f32 0.5, %v644
      %v646 = vsub.f32 1.5, %v645
      %v647 = vmul.f32 %v642, %v646
      %v648 = vmul.f32 %v623, %v647
      %vm649 = vcmp.eq.f32.partialorder %v623, inf
      %v650 = vsel %vm649, %v623, %v648
      %vm651 = vcmp.eq.f32.partialorder %v623, 0.0
      %v652 = vand.u32 %v623, 2147483648
      %v653 = vsel %vm651, %v652, %v650
      %v654 = vrsqrt.pop %v625
      %v655 = vmul.f32 %v654, %v625
      %v656 = vmul.f32 %v655, %v654
      %v657 = vmul.f32 0.5, %v656
      %v658 = vsub.f32 1.5, %v657
      %v659 = vmul.f32 %v654, %v658
      %v660 = vmul.f32 %v625, %v659
      %vm661 = vcmp.eq.f32.partialorder %v625, inf
      %v662 = vsel %vm661, %v625, %v660
      %vm663 = vcmp.eq.f32.partialorder %v625, 0.0
      %v664 = vand.u32 %v625, 2147483648
      %v665 = vsel %vm663, %v664, %v662
      %v666 = vrsqrt.pop %v628
      %v667 = vmul.f32 %v666, %v628
      %v668 = vmul.f32 %v667, %v666
      %v669 = vmul.f32 0.5, %v668
      %v670 = vsub.f32 1.5, %v669
      %v671 = vmul.f32 %v666, %v670
      %v672 = vmul.f32 %v628, %v671
      %vm673 = vcmp.eq.f32.partialorder %v628, inf
      %v674 = vsel %vm673, %v628, %v672
      %vm675 = vcmp.eq.f32.partialorder %v628, 0.0
      %v676 = vand.u32 %v628, 2147483648
      %v677 = vsel %vm675, %v676, %v674
      %v678 = vrsqrt.pop %v630
      %v679 = vmul.f32 %v678, %v630
      %v680 = vmul.f32 %v679, %v678
      %v681 = vmul.f32 0.5, %v680
      %v682 = vsub.f32 1.5, %v681
      %v683 = vmul.f32 %v678, %v682
      %v684 = vmul.f32 %v630, %v683
      %vm685 = vcmp.eq.f32.partialorder %v630, inf
      %v686 = vsel %vm685, %v630, %v684
      %vm687 = vcmp.eq.f32.partialorder %v630, 0.0
      %v688 = vand.u32 %v630, 2147483648
      %v689 = vsel %vm687, %v688, %v686
      %v690 = vrsqrt.pop %v633
      %v691 = vmul.f32 %v690, %v633
      %v692 = vmul.f32 %v691, %v690
      %v693 = vmul.f32 0.5, %v692
      %v694 = vsub.f32 1.5, %v693
      %v695 = vmul.f32 %v690, %v694
      %v696 = vmul.f32 %v633, %v695
      %vm697 = vcmp.eq.f32.partialorder %v633, inf
      %v698 = vsel %vm697, %v633, %v696
      %vm699 = vcmp.eq.f32.partialorder %v633, 0.0
      %v700 = vand.u32 %v633, 2147483648
      %v701 = vsel %vm699, %v700, %v698
      %v702 = vrsqrt.pop %v635
      %v703 = vmul.f32 %v702, %v635
      %v704 = vmul.f32 %v703, %v702
      %v705 = vmul.f32 0.5, %v704
      %v706 = vsub.f32 1.5, %v705
      %v707 = vmul.f32 %v702, %v706
      %v708 = vmul.f32 %v635, %v707
      %vm709 = vcmp.eq.f32.partialorder %v635, inf
      %v710 = vsel %vm709, %v635, %v708
      %vm711 = vcmp.eq.f32.partialorder %v635, 0.0
      %v712 = vand.u32 %v635, 2147483648
      %v713 = vsel %vm711, %v712, %v710
      %v714 = vrsqrt.pop %v638
      %v715 = vmul.f32 %v714, %v638
      %v716 = vmul.f32 %v715, %v714
      %v717 = vmul.f32 0.5, %v716
      %v718 = vsub.f32 1.5, %v717
      %v719 = vmul.f32 %v714, %v718
      %v720 = vmul.f32 %v638, %v719
      %vm721 = vcmp.eq.f32.partialorder %v638, inf
      %v722 = vsel %vm721, %v638, %v720
      %vm723 = vcmp.eq.f32.partialorder %v638, 0.0
      %v724 = vand.u32 %v638, 2147483648
      %v725 = vsel %vm723, %v724, %v722
      %v726 = vrsqrt.pop %v640
      %v727 = vmul.f32 %v726, %v640
      %v728 = vmul.f32 %v727, %v726
      %v729 = vmul.f32 0.5, %v728
      %v730 = vsub.f32 1.5, %v729
      %v731 = vmul.f32 %v726, %v730
      %v732 = vmul.f32 %v640, %v731
      %vm733 = vcmp.eq.f32.partialorder %v640, inf
      %v734 = vsel %vm733, %v640, %v732
      %vm735 = vcmp.eq.f32.partialorder %v640, 0.0
      %v736 = vand.u32 %v640, 2147483648
      %v737 = vsel %vm735, %v736, %v734
      %v738 = vld [vmem:[%s7] sm:$0x3]
      %v739 = vld [vmem:[%s8] sm:$0x1]
      %v741 = vperm.slane %v739, 0
      %v744 = vsel %vm383, %v738, 0
      %746 = vmatpush.bf16.msra.mxu0 0
      %747 = vmatpush.bf16.msra.mxu0 0
      %748 = vmatpush.bf16.msra.mxu0 0
      %749 = vmatpush.bf16.msra.mxu0 0
      %750 = vmatpush.bf16.msra.mxu0 0
      %751 = vmatpush.bf16.msra.mxu0 0
      %752 = vmatpush.bf16.msra.mxu0 0
      %753 = vmatpush.bf16.msra.mxu0 %v744
      %754 = vmatmul.bf16.gmra.mxu0 %v372
      %v755 = vpop.f32.mrf.mxu0
      %v756 = vadd.f32 %v741, %v755
      %v757 = vpop.f32.mrf.mxu0
      %v758 = vadd.f32 %v741, %v757
      %759 = vmatmul.bf16.gmra.mxu0 %v375
      %v760 = vpop.f32.mrf.mxu0
      %v761 = vadd.f32 %v741, %v760
      %v762 = vpop.f32.mrf.mxu0
      %v763 = vadd.f32 %v741, %v762
      %764 = vmatmul.bf16.gmra.mxu0 %v378
      %v765 = vpop.f32.mrf.mxu0
      %v766 = vadd.f32 %v741, %v765
      %v767 = vpop.f32.mrf.mxu0
      %v768 = vadd.f32 %v741, %v767
      %769 = vmatmul.bf16.gmra.mxu0 %v381
      %v770 = vpop.f32.mrf.mxu0
      %v771 = vadd.f32 %v741, %v770
      %v772 = vpop.f32.mrf.mxu0
      %v773 = vadd.f32 %v741, %v772
      %774 = vdwg.mxu0
      %v775 = vmul.f32 %v514, %v653
      %v776 = vmul.f32 %v516, %v665
      %v777 = vmul.f32 %v519, %v677
      %v778 = vmul.f32 %v521, %v689
      %v779 = vmul.f32 %v524, %v701
      %v780 = vmul.f32 %v526, %v713
      %v781 = vmul.f32 %v529, %v725
      %v782 = vmul.f32 %v531, %v737
      %v783 = vadd.f32 %v775, %v756
      %v784 = vadd.f32 %v776, %v758
      %v785 = vadd.f32 %v777, %v761
      %v786 = vadd.f32 %v778, %v763
      %v787 = vadd.f32 %v779, %v766
      %v788 = vadd.f32 %v780, %v768
      %v789 = vadd.f32 %v781, %v771
      %v790 = vadd.f32 %v782, %v773
      %v791 = vpack.c.bf16 %v783, %v783
      %v792 = vpack.c.bf16 %v784, %v784
      %v793 = vpack.c.bf16 %v785, %v785
      %v794 = vpack.c.bf16 %v786, %v786
      %v795 = vpack.c.bf16 %v787, %v787
      %v796 = vpack.c.bf16 %v788, %v788
      %v797 = vpack.c.bf16 %v789, %v789
      %v798 = vpack.c.bf16 %v790, %v790
      %799 = vst [vmem:[%s334] sm:$0xf] %v791
      %800 = vst [vmem:[%s334 + $0x4] sm:$0xf] %v792
      %801 = vst [vmem:[%s334 + $0x8] sm:$0xf] %v793
      %802 = vst [vmem:[%s334 + $0xc] sm:$0xf] %v794
      %803 = vst [vmem:[%s334 + $0x10] sm:$0xf] %v795
      %804 = vst [vmem:[%s334 + $0x14] sm:$0xf] %v796
      %805 = vst [vmem:[%s334 + $0x18] sm:$0xf] %v797
      %806 = vst [vmem:[%s334 + $0x1c] sm:$0xf] %v798
      %s807 = smul.u32 8, %s20
      %p808 = scmp.lt.s32.totalorder %s807, 15
      %s809 = scalar_select %p808, %s807, 15
      %s810 = smul.addr %s809, 4
      %s811 = scalar_lea.vmem %s9, %s810
      // Predicated region
      $region57: #{residual_block_upsample.1} parent=55 // pred_check
        %p812 = pneg %p232
      $region58: #{residual_block_upsample.1} parent=55 // pred_check_branch
        %814 = sbr.rel (%p812) target = $region60
      $region59: #{residual_block_upsample.1} parent=55 // pred_region
        %s815 = smul.u32 8, %s20
      $region60: #{residual_block_upsample.1} parent=55 // pred_fallthru
        _
    $region56: #{residual_block_upsample.1} parent=5 // pred_fallthru
      _
    %p816 = scmp.le.s32.totalorder 2, %s15
    // Predicated region
    $region61: #{residual_block_upsample.1} parent=5 // pred_check
      %p817 = pneg %p816
    $region62: #{residual_block_upsample.1} parent=5 // pred_check_branch
      %819 = sbr.rel (%p817) target = $region64
    $region63: #{residual_block_upsample.1} parent=5 // pred_region
      %s820 = ssub.s32 %s15, 2
      // Predicated region
      $region65: #{residual_block_upsample.1} parent=63 // pred_check
        %p821 = pneg %p238
      $region66: #{residual_block_upsample.1} parent=63 // pred_check_branch
        %823 = sbr.rel (%p821) target = $region68
      $region67: #{residual_block_upsample.1} parent=63 // pred_region
        %s824 = smul.u32 8, %s21
        %p825 = scmp.lt.s32.totalorder %s824, 15
        %s826 = scalar_select %p825, %s824, 15
        %s827 = smul.addr %s826, 4
        %s828 = scalar_lea.vmem %s9, %s827
      $region68: #{residual_block_upsample.1} parent=63 // pred_fallthru
        _
    $region64: #{residual_block_upsample.1} parent=5 // pred_fallthru
      _
  $region6: #{residual_block_upsample.1} parent=0 // loop_footer
    %s19 = sadd.s32 1, %s15
  $region7: #{residual_block_upsample.1} parent=0 // loop_footer_branch
    %14 = sbr.rel target = $region3
  $region8: #{residual_block_upsample.1} parent=0 // loop_exit
    _

</llo_original>
